<compile_context>
chip_gen: v7x
topology: tpu7x:2x2x1
jax: 0.10.0
libtpu: 0.0.40
codegen_flags: <defaults>
</compile_context>

<pallas_src>
import jax
import jax.numpy as jnp
from jax import lax
from jax.experimental import pallas as pl
from jax.experimental.pallas import tpu as pltpu


def _lstm_kernel(gx_ref, whh_ref, wfc_ref, bfc_ref, out_ref):
    T, B, G = gx_ref.shape
    H = G // 4

    # TODO(synk): the loop-invariant (32,128) recurrent weight could be held resident in
    # the MXU across timesteps via pltpu.matmul_push_rhs / matmul_acc_lhs / matmul_pop on
    # v5e/v6e (FIFO MRF); kept as jnp.dot for portability across the v7x MRB result path.
    def step(t, carry):
        h, c = carry                                                   # (B, H) each, in vregs
        gates = gx_ref[t] + jnp.dot(h, whh_ref[...],
                                    preferred_element_type=jnp.float32)  # (B, 4H) one MXU push
        sig = jax.nn.sigmoid(gates)                                    # one EUP push, 128 lanes
        i = sig[:, 0 * H:1 * H]
        f = sig[:, 1 * H:2 * H]
        o = sig[:, 3 * H:4 * H]
        g = jnp.tanh(gates[:, 2 * H:3 * H])                            # one EUP push (g lanes)
        c_new = f * c + i * g
        h_new = o * jnp.tanh(c_new)
        return (h_new, c_new)

    h0 = jnp.zeros((B, H), jnp.float32)
    c0 = jnp.zeros((B, H), jnp.float32)
    # T is small and static -> full unroll is the right call (partial unroll if T grows).
    h, _ = lax.fori_loop(0, T, step, (h0, c0), unroll=True)

    # Final projection fc(h) on the last hidden state only (== fc(out)[:, -1, :]).
    # RHS has a single column, so a VPU multiply + lane (XLU) reduction beats an MXU matmul.
    out_ref[...] = (jnp.sum(h * wfc_ref[...], axis=-1, keepdims=True)
                    + bfc_ref[...]).astype(out_ref.dtype)


def lstm_interpolator_forward(x, w_ih, w_hh, b_ih, b_hh, fc_w, fc_b):
    """x: (B, T, 1) float32.  Returns (B, 1) float32."""
    B, T, _ = x.shape
    H = w_hh.shape[1]

    # Hoist the input contribution out of the recurrence, built directly in (T, B, 4H)
    # order (no separate transpose HLO). PyTorch gate/column order is [i, f, g, o].
    bias = (b_ih + b_hh)[None, None, :]                                  # (1, 1, 4H)
    gates_x = jnp.einsum('bt,g->tbg', x[:, :, 0], w_ih[:, 0]) + bias     # (T, B, 4H)

    whh_t = jnp.transpose(w_hh, (1, 0))                                  # (H, 4H)
    wfc = fc_w                                                           # (1, H)
    bfc = fc_b[None, :]                                                  # (1, 1)

    # Whole-array residency check. At (T,B,H)=(8,2,32) this is a few KiB on any chip.
    # TODO(synk): if B/T/H grow (esp. on v7x's 64 MiB VMEM), add a grid over B with
    # B-blocked BlockSpecs and dimension_semantics=("parallel",) so work also shards
    # across v7x's two TensorCores; raise vmem_limit_bytes via pltpu.CompilerParams.
    resident_bytes = 4 * (T * max(B, 8) * 4 * H + H * 4 * H + 2 * max(B, 8) * H)
    assert resident_bytes < 16 * 1024 * 1024, "inputs too large for grid-less residency"

    vmem = pl.BlockSpec(memory_space=pltpu.MemorySpace.VMEM)

    return pl.pallas_call(
        _lstm_kernel,
        out_shape=jax.ShapeDtypeStruct((B, 1), jnp.float32),
        in_specs=[vmem] * 4,
        out_specs=vmem,
    )(gates_x, whh_t, wfc, bfc)


def _reference_forward(x, w_ih, w_hh, b_ih, b_hh, fc_w, fc_b):
    """Pure-JAX reference matching PyTorch nn.LSTM semantics (gate order i,f,g,o)."""
    B, T, _ = x.shape
    H = w_hh.shape[1]
    h = jnp.zeros((B, H), jnp.float32)
    c = jnp.zeros((B, H), jnp.float32)
    for t in range(T):
        x_t = x[:, t, :]                                           # (B, 1)
        gates = x_t @ w_ih.T + h @ w_hh.T + b_ih + b_hh            # (B, 4H)
        i = jax.nn.sigmoid(gates[:, 0 * H:1 * H])
        f = jax.nn.sigmoid(gates[:, 1 * H:2 * H])
        g = jnp.tanh(gates[:, 2 * H:3 * H])
        o = jax.nn.sigmoid(gates[:, 3 * H:4 * H])
        c = f * c + i * g
        h = o * jnp.tanh(c)
    return h @ fc_w.T + fc_b


if __name__ == "__main__":
    B, T, H = 2, 8, 32

    key = jax.random.PRNGKey(0)
    ks = jax.random.split(key, 7)
    bound = 1.0 / (H ** 0.5)  # PyTorch default init: U(-1/sqrt(H), 1/sqrt(H))
    w_ih = jax.random.uniform(ks[0], (4 * H, 1), jnp.float32, -bound, bound)
    w_hh = jax.random.uniform(ks[1], (4 * H, H), jnp.float32, -bound, bound)
    b_ih = jax.random.uniform(ks[2], (4 * H,), jnp.float32, -bound, bound)
    b_hh = jax.random.uniform(ks[3], (4 * H,), jnp.float32, -bound, bound)
    fc_w = jax.random.uniform(ks[4], (1, H), jnp.float32, -bound, bound)
    fc_b = jax.random.uniform(ks[5], (1,), jnp.float32, -bound, bound)

    x = jax.random.normal(ks[6], (B, T, 1), jnp.float32)

    out = lstm_interpolator_forward(x, w_ih, w_hh, b_ih, b_hh, fc_w, fc_b)
    out = jax.block_until_ready(out)

    ref = _reference_forward(x, w_ih, w_hh, b_ih, b_hh, fc_w, fc_b)
    assert out.shape == (B, 1)
    assert jnp.allclose(out, ref, atol=1e-5, rtol=1e-5), (out, ref)

    print("KERNEL_OK")
</pallas_src>

<mosaic_0001>
module attributes {stable_mosaic.version = 11 : i64} {
  func.func @_lstm_kernel(%arg0: memref<8x2x128xf32, #tpu.memory_space<vmem>>, %arg1: memref<32x128xf32, #tpu.memory_space<vmem>>, %arg2: memref<1x32xf32, #tpu.memory_space<vmem>>, %arg3: memref<1x1xf32, #tpu.memory_space<vmem>>, %arg4: memref<2x1xf32, #tpu.memory_space<vmem>>) attributes {dimension_semantics = [], scalar_prefetch = 0 : i64, scratch_operands = 0 : i64, tpu.core_type = #tpu.core_type<tc>} {
    %cst = arith.constant 0.000000e+00 : f32
    %0 = vector.broadcast %cst : f32 to vector<2x32xf32>
    %cst_0 = arith.constant 0.000000e+00 : f32
    %1 = vector.broadcast %cst_0 : f32 to vector<2x32xf32>
    %c0_i32 = arith.constant 0 : i32
    %2 = arith.index_cast %c0_i32 : i32 to index
    %c0 = arith.constant 0 : index
    %c0_1 = arith.constant 0 : index
    %3 = vector.load %arg0[%2, %c0, %c0_1] : memref<8x2x128xf32, #tpu.memory_space<vmem>>, vector<1x2x128xf32>
    %4 = vector.shape_cast %3 : vector<1x2x128xf32> to vector<2x128xf32>
    %c0_2 = arith.constant 0 : index
    %c0_3 = arith.constant 0 : index
    %5 = vector.load %arg1[%c0_2, %c0_3] : memref<32x128xf32, #tpu.memory_space<vmem>>, vector<32x128xf32>
    %cst_4 = arith.constant dense<0.000000e+00> : vector<2x128xf32>
    %6 = tpu.matmul %0, %5, %cst_4 {dimension_numbers = #tpu.dot_dimension_numbers<[1], [0], [0], [1], [0, 0, 1, 1], [], []>} : vector<2x32xf32>, vector<32x128xf32>, vector<2x128xf32> -> vector<2x128xf32>
    %7 = arith.addf %4, %6 : vector<2x128xf32>
    %8 = arith.negf %7 : vector<2x128xf32>
    %9 = math.exp %8 : vector<2x128xf32>
    %cst_5 = arith.constant 1.000000e+00 : f32
    %10 = vector.broadcast %cst_5 : f32 to vector<2x128xf32>
    %11 = arith.addf %10, %9 : vector<2x128xf32>
    %12 = arith.divf %10, %11 : vector<2x128xf32>
    %13 = vector.extract_strided_slice %12 {offsets = [0, 0], sizes = [2, 32], strides = [1, 1]} : vector<2x128xf32> to vector<2x32xf32>
    %14 = vector.extract_strided_slice %12 {offsets = [0, 32], sizes = [2, 32], strides = [1, 1]} : vector<2x128xf32> to vector<2x32xf32>
    %15 = vector.extract_strided_slice %12 {offsets = [0, 96], sizes = [2, 32], strides = [1, 1]} : vector<2x128xf32> to vector<2x32xf32>
    %16 = vector.extract_strided_slice %7 {offsets = [0, 64], sizes = [2, 32], strides = [1, 1]} : vector<2x128xf32> to vector<2x32xf32>
    %17 = math.tanh %16 : vector<2x32xf32>
    %18 = arith.mulf %14, %1 : vector<2x32xf32>
    %19 = arith.mulf %13, %17 : vector<2x32xf32>
    %20 = arith.addf %18, %19 : vector<2x32xf32>
    %21 = math.tanh %20 : vector<2x32xf32>
    %22 = arith.mulf %15, %21 : vector<2x32xf32>
    %c1_i32 = arith.constant 1 : i32
    %23 = arith.index_cast %c1_i32 : i32 to index
    %c0_6 = arith.constant 0 : index
    %c0_7 = arith.constant 0 : index
    %24 = vector.load %arg0[%23, %c0_6, %c0_7] : memref<8x2x128xf32, #tpu.memory_space<vmem>>, vector<1x2x128xf32>
    %25 = vector.shape_cast %24 : vector<1x2x128xf32> to vector<2x128xf32>
    %c0_8 = arith.constant 0 : index
    %c0_9 = arith.constant 0 : index
    %26 = vector.load %arg1[%c0_8, %c0_9] : memref<32x128xf32, #tpu.memory_space<vmem>>, vector<32x128xf32>
    %cst_10 = arith.constant dense<0.000000e+00> : vector<2x128xf32>
    %27 = tpu.matmul %22, %26, %cst_10 {dimension_numbers = #tpu.dot_dimension_numbers<[1], [0], [0], [1], [0, 0, 1, 1], [], []>} : vector<2x32xf32>, vector<32x128xf32>, vector<2x128xf32> -> vector<2x128xf32>
    %28 = arith.addf %25, %27 : vector<2x128xf32>
    %29 = arith.negf %28 : vector<2x128xf32>
    %30 = math.exp %29 : vector<2x128xf32>
    %cst_11 = arith.constant 1.000000e+00 : f32
    %31 = vector.broadcast %cst_11 : f32 to vector<2x128xf32>
    %32 = arith.addf %31, %30 : vector<2x128xf32>
    %33 = arith.divf %31, %32 : vector<2x128xf32>
    %34 = vector.extract_strided_slice %33 {offsets = [0, 0], sizes = [2, 32], strides = [1, 1]} : vector<2x128xf32> to vector<2x32xf32>
    %35 = vector.extract_strided_slice %33 {offsets = [0, 32], sizes = [2, 32], strides = [1, 1]} : vector<2x128xf32> to vector<2x32xf32>
    %36 = vector.extract_strided_slice %33 {offsets = [0, 96], sizes = [2, 32], strides = [1, 1]} : vector<2x128xf32> to vector<2x32xf32>
    %37 = vector.extract_strided_slice %28 {offsets = [0, 64], sizes = [2, 32], strides = [1, 1]} : vector<2x128xf32> to vector<2x32xf32>
    %38 = math.tanh %37 : vector<2x32xf32>
    %39 = arith.mulf %35, %20 : vector<2x32xf32>
    %40 = arith.mulf %34, %38 : vector<2x32xf32>
    %41 = arith.addf %39, %40 : vector<2x32xf32>
    %42 = math.tanh %41 : vector<2x32xf32>
    %43 = arith.mulf %36, %42 : vector<2x32xf32>
    %c2_i32 = arith.constant 2 : i32
    %44 = arith.index_cast %c2_i32 : i32 to index
    %c0_12 = arith.constant 0 : index
    %c0_13 = arith.constant 0 : index
    %45 = vector.load %arg0[%44, %c0_12, %c0_13] : memref<8x2x128xf32, #tpu.memory_space<vmem>>, vector<1x2x128xf32>
    %46 = vector.shape_cast %45 : vector<1x2x128xf32> to vector<2x128xf32>
    %c0_14 = arith.constant 0 : index
    %c0_15 = arith.constant 0 : index
    %47 = vector.load %arg1[%c0_14, %c0_15] : memref<32x128xf32, #tpu.memory_space<vmem>>, vector<32x128xf32>
    %cst_16 = arith.constant dense<0.000000e+00> : vector<2x128xf32>
    %48 = tpu.matmul %43, %47, %cst_16 {dimension_numbers = #tpu.dot_dimension_numbers<[1], [0], [0], [1], [0, 0, 1, 1], [], []>} : vector<2x32xf32>, vector<32x128xf32>, vector<2x128xf32> -> vector<2x128xf32>
    %49 = arith.addf %46, %48 : vector<2x128xf32>
    %50 = arith.negf %49 : vector<2x128xf32>
    %51 = math.exp %50 : vector<2x128xf32>
    %cst_17 = arith.constant 1.000000e+00 : f32
    %52 = vector.broadcast %cst_17 : f32 to vector<2x128xf32>
    %53 = arith.addf %52, %51 : vector<2x128xf32>
    %54 = arith.divf %52, %53 : vector<2x128xf32>
    %55 = vector.extract_strided_slice %54 {offsets = [0, 0], sizes = [2, 32], strides = [1, 1]} : vector<2x128xf32> to vector<2x32xf32>
    %56 = vector.extract_strided_slice %54 {offsets = [0, 32], sizes = [2, 32], strides = [1, 1]} : vector<2x128xf32> to vector<2x32xf32>
    %57 = vector.extract_strided_slice %54 {offsets = [0, 96], sizes = [2, 32], strides = [1, 1]} : vector<2x128xf32> to vector<2x32xf32>
    %58 = vector.extract_strided_slice %49 {offsets = [0, 64], sizes = [2, 32], strides = [1, 1]} : vector<2x128xf32> to vector<2x32xf32>
    %59 = math.tanh %58 : vector<2x32xf32>
    %60 = arith.mulf %56, %41 : vector<2x32xf32>
    %61 = arith.mulf %55, %59 : vector<2x32xf32>
    %62 = arith.addf %60, %61 : vector<2x32xf32>
    %63 = math.tanh %62 : vector<2x32xf32>
    %64 = arith.mulf %57, %63 : vector<2x32xf32>
    %c3_i32 = arith.constant 3 : i32
    %65 = arith.index_cast %c3_i32 : i32 to index
    %c0_18 = arith.constant 0 : index
    %c0_19 = arith.constant 0 : index
    %66 = vector.load %arg0[%65, %c0_18, %c0_19] : memref<8x2x128xf32, #tpu.memory_space<vmem>>, vector<1x2x128xf32>
    %67 = vector.shape_cast %66 : vector<1x2x128xf32> to vector<2x128xf32>
    %c0_20 = arith.constant 0 : index
    %c0_21 = arith.constant 0 : index
    %68 = vector.load %arg1[%c0_20, %c0_21] : memref<32x128xf32, #tpu.memory_space<vmem>>, vector<32x128xf32>
    %cst_22 = arith.constant dense<0.000000e+00> : vector<2x128xf32>
    %69 = tpu.matmul %64, %68, %cst_22 {dimension_numbers = #tpu.dot_dimension_numbers<[1], [0], [0], [1], [0, 0, 1, 1], [], []>} : vector<2x32xf32>, vector<32x128xf32>, vector<2x128xf32> -> vector<2x128xf32>
    %70 = arith.addf %67, %69 : vector<2x128xf32>
    %71 = arith.negf %70 : vector<2x128xf32>
    %72 = math.exp %71 : vector<2x128xf32>
    %cst_23 = arith.constant 1.000000e+00 : f32
    %73 = vector.broadcast %cst_23 : f32 to vector<2x128xf32>
    %74 = arith.addf %73, %72 : vector<2x128xf32>
    %75 = arith.divf %73, %74 : vector<2x128xf32>
    %76 = vector.extract_strided_slice %75 {offsets = [0, 0], sizes = [2, 32], strides = [1, 1]} : vector<2x128xf32> to vector<2x32xf32>
    %77 = vector.extract_strided_slice %75 {offsets = [0, 32], sizes = [2, 32], strides = [1, 1]} : vector<2x128xf32> to vector<2x32xf32>
    %78 = vector.extract_strided_slice %75 {offsets = [0, 96], sizes = [2, 32], strides = [1, 1]} : vector<2x128xf32> to vector<2x32xf32>
    %79 = vector.extract_strided_slice %70 {offsets = [0, 64], sizes = [2, 32], strides = [1, 1]} : vector<2x128xf32> to vector<2x32xf32>
    %80 = math.tanh %79 : vector<2x32xf32>
    %81 = arith.mulf %77, %62 : vector<2x32xf32>
    %82 = arith.mulf %76, %80 : vector<2x32xf32>
    %83 = arith.addf %81, %82 : vector<2x32xf32>
    %84 = math.tanh %83 : vector<2x32xf32>
    %85 = arith.mulf %78, %84 : vector<2x32xf32>
    %c4_i32 = arith.constant 4 : i32
    %86 = arith.index_cast %c4_i32 : i32 to index
    %c0_24 = arith.constant 0 : index
    %c0_25 = arith.constant 0 : index
    %87 = vector.load %arg0[%86, %c0_24, %c0_25] : memref<8x2x128xf32, #tpu.memory_space<vmem>>, vector<1x2x128xf32>
    %88 = vector.shape_cast %87 : vector<1x2x128xf32> to vector<2x128xf32>
    %c0_26 = arith.constant 0 : index
    %c0_27 = arith.constant 0 : index
    %89 = vector.load %arg1[%c0_26, %c0_27] : memref<32x128xf32, #tpu.memory_space<vmem>>, vector<32x128xf32>
    %cst_28 = arith.constant dense<0.000000e+00> : vector<2x128xf32>
    %90 = tpu.matmul %85, %89, %cst_28 {dimension_numbers = #tpu.dot_dimension_numbers<[1], [0], [0], [1], [0, 0, 1, 1], [], []>} : vector<2x32xf32>, vector<32x128xf32>, vector<2x128xf32> -> vector<2x128xf32>
    %91 = arith.addf %88, %90 : vector<2x128xf32>
    %92 = arith.negf %91 : vector<2x128xf32>
    %93 = math.exp %92 : vector<2x128xf32>
    %cst_29 = arith.constant 1.000000e+00 : f32
    %94 = vector.broadcast %cst_29 : f32 to vector<2x128xf32>
    %95 = arith.addf %94, %93 : vector<2x128xf32>
    %96 = arith.divf %94, %95 : vector<2x128xf32>
    %97 = vector.extract_strided_slice %96 {offsets = [0, 0], sizes = [2, 32], strides = [1, 1]} : vector<2x128xf32> to vector<2x32xf32>
    %98 = vector.extract_strided_slice %96 {offsets = [0, 32], sizes = [2, 32], strides = [1, 1]} : vector<2x128xf32> to vector<2x32xf32>
    %99 = vector.extract_strided_slice %96 {offsets = [0, 96], sizes = [2, 32], strides = [1, 1]} : vector<2x128xf32> to vector<2x32xf32>
    %100 = vector.extract_strided_slice %91 {offsets = [0, 64], sizes = [2, 32], strides = [1, 1]} : vector<2x128xf32> to vector<2x32xf32>
    %101 = math.tanh %100 : vector<2x32xf32>
    %102 = arith.mulf %98, %83 : vector<2x32xf32>
    %103 = arith.mulf %97, %101 : vector<2x32xf32>
    %104 = arith.addf %102, %103 : vector<2x32xf32>
    %105 = math.tanh %104 : vector<2x32xf32>
    %106 = arith.mulf %99, %105 : vector<2x32xf32>
    %c5_i32 = arith.constant 5 : i32
    %107 = arith.index_cast %c5_i32 : i32 to index
    %c0_30 = arith.constant 0 : index
    %c0_31 = arith.constant 0 : index
    %108 = vector.load %arg0[%107, %c0_30, %c0_31] : memref<8x2x128xf32, #tpu.memory_space<vmem>>, vector<1x2x128xf32>
    %109 = vector.shape_cast %108 : vector<1x2x128xf32> to vector<2x128xf32>
    %c0_32 = arith.constant 0 : index
    %c0_33 = arith.constant 0 : index
    %110 = vector.load %arg1[%c0_32, %c0_33] : memref<32x128xf32, #tpu.memory_space<vmem>>, vector<32x128xf32>
    %cst_34 = arith.constant dense<0.000000e+00> : vector<2x128xf32>
    %111 = tpu.matmul %106, %110, %cst_34 {dimension_numbers = #tpu.dot_dimension_numbers<[1], [0], [0], [1], [0, 0, 1, 1], [], []>} : vector<2x32xf32>, vector<32x128xf32>, vector<2x128xf32> -> vector<2x128xf32>
    %112 = arith.addf %109, %111 : vector<2x128xf32>
    %113 = arith.negf %112 : vector<2x128xf32>
    %114 = math.exp %113 : vector<2x128xf32>
    %cst_35 = arith.constant 1.000000e+00 : f32
    %115 = vector.broadcast %cst_35 : f32 to vector<2x128xf32>
    %116 = arith.addf %115, %114 : vector<2x128xf32>
    %117 = arith.divf %115, %116 : vector<2x128xf32>
    %118 = vector.extract_strided_slice %117 {offsets = [0, 0], sizes = [2, 32], strides = [1, 1]} : vector<2x128xf32> to vector<2x32xf32>
    %119 = vector.extract_strided_slice %117 {offsets = [0, 32], sizes = [2, 32], strides = [1, 1]} : vector<2x128xf32> to vector<2x32xf32>
    %120 = vector.extract_strided_slice %117 {offsets = [0, 96], sizes = [2, 32], strides = [1, 1]} : vector<2x128xf32> to vector<2x32xf32>
    %121 = vector.extract_strided_slice %112 {offsets = [0, 64], sizes = [2, 32], strides = [1, 1]} : vector<2x128xf32> to vector<2x32xf32>
    %122 = math.tanh %121 : vector<2x32xf32>
    %123 = arith.mulf %119, %104 : vector<2x32xf32>
    %124 = arith.mulf %118, %122 : vector<2x32xf32>
    %125 = arith.addf %123, %124 : vector<2x32xf32>
    %126 = math.tanh %125 : vector<2x32xf32>
    %127 = arith.mulf %120, %126 : vector<2x32xf32>
    %c6_i32 = arith.constant 6 : i32
    %128 = arith.index_cast %c6_i32 : i32 to index
    %c0_36 = arith.constant 0 : index
    %c0_37 = arith.constant 0 : index
    %129 = vector.load %arg0[%128, %c0_36, %c0_37] : memref<8x2x128xf32, #tpu.memory_space<vmem>>, vector<1x2x128xf32>
    %130 = vector.shape_cast %129 : vector<1x2x128xf32> to vector<2x128xf32>
    %c0_38 = arith.constant 0 : index
    %c0_39 = arith.constant 0 : index
    %131 = vector.load %arg1[%c0_38, %c0_39] : memref<32x128xf32, #tpu.memory_space<vmem>>, vector<32x128xf32>
    %cst_40 = arith.constant dense<0.000000e+00> : vector<2x128xf32>
    %132 = tpu.matmul %127, %131, %cst_40 {dimension_numbers = #tpu.dot_dimension_numbers<[1], [0], [0], [1], [0, 0, 1, 1], [], []>} : vector<2x32xf32>, vector<32x128xf32>, vector<2x128xf32> -> vector<2x128xf32>
    %133 = arith.addf %130, %132 : vector<2x128xf32>
    %134 = arith.negf %133 : vector<2x128xf32>
    %135 = math.exp %134 : vector<2x128xf32>
    %cst_41 = arith.constant 1.000000e+00 : f32
    %136 = vector.broadcast %cst_41 : f32 to vector<2x128xf32>
    %137 = arith.addf %136, %135 : vector<2x128xf32>
    %138 = arith.divf %136, %137 : vector<2x128xf32>
    %139 = vector.extract_strided_slice %138 {offsets = [0, 0], sizes = [2, 32], strides = [1, 1]} : vector<2x128xf32> to vector<2x32xf32>
    %140 = vector.extract_strided_slice %138 {offsets = [0, 32], sizes = [2, 32], strides = [1, 1]} : vector<2x128xf32> to vector<2x32xf32>
    %141 = vector.extract_strided_slice %138 {offsets = [0, 96], sizes = [2, 32], strides = [1, 1]} : vector<2x128xf32> to vector<2x32xf32>
    %142 = vector.extract_strided_slice %133 {offsets = [0, 64], sizes = [2, 32], strides = [1, 1]} : vector<2x128xf32> to vector<2x32xf32>
    %143 = math.tanh %142 : vector<2x32xf32>
    %144 = arith.mulf %140, %125 : vector<2x32xf32>
    %145 = arith.mulf %139, %143 : vector<2x32xf32>
    %146 = arith.addf %144, %145 : vector<2x32xf32>
    %147 = math.tanh %146 : vector<2x32xf32>
    %148 = arith.mulf %141, %147 : vector<2x32xf32>
    %c7_i32 = arith.constant 7 : i32
    %149 = arith.index_cast %c7_i32 : i32 to index
    %c0_42 = arith.constant 0 : index
    %c0_43 = arith.constant 0 : index
    %150 = vector.load %arg0[%149, %c0_42, %c0_43] : memref<8x2x128xf32, #tpu.memory_space<vmem>>, vector<1x2x128xf32>
    %151 = vector.shape_cast %150 : vector<1x2x128xf32> to vector<2x128xf32>
    %c0_44 = arith.constant 0 : index
    %c0_45 = arith.constant 0 : index
    %152 = vector.load %arg1[%c0_44, %c0_45] : memref<32x128xf32, #tpu.memory_space<vmem>>, vector<32x128xf32>
    %cst_46 = arith.constant dense<0.000000e+00> : vector<2x128xf32>
    %153 = tpu.matmul %148, %152, %cst_46 {dimension_numbers = #tpu.dot_dimension_numbers<[1], [0], [0], [1], [0, 0, 1, 1], [], []>} : vector<2x32xf32>, vector<32x128xf32>, vector<2x128xf32> -> vector<2x128xf32>
    %154 = arith.addf %151, %153 : vector<2x128xf32>
    %155 = arith.negf %154 : vector<2x128xf32>
    %156 = math.exp %155 : vector<2x128xf32>
    %cst_47 = arith.constant 1.000000e+00 : f32
    %157 = vector.broadcast %cst_47 : f32 to vector<2x128xf32>
    %158 = arith.addf %157, %156 : vector<2x128xf32>
    %159 = arith.divf %157, %158 : vector<2x128xf32>
    %160 = vector.extract_strided_slice %159 {offsets = [0, 0], sizes = [2, 32], strides = [1, 1]} : vector<2x128xf32> to vector<2x32xf32>
    %161 = vector.extract_strided_slice %159 {offsets = [0, 32], sizes = [2, 32], strides = [1, 1]} : vector<2x128xf32> to vector<2x32xf32>
    %162 = vector.extract_strided_slice %159 {offsets = [0, 96], sizes = [2, 32], strides = [1, 1]} : vector<2x128xf32> to vector<2x32xf32>
    %163 = vector.extract_strided_slice %154 {offsets = [0, 64], sizes = [2, 32], strides = [1, 1]} : vector<2x128xf32> to vector<2x32xf32>
    %164 = math.tanh %163 : vector<2x32xf32>
    %165 = arith.mulf %161, %146 : vector<2x32xf32>
    %166 = arith.mulf %160, %164 : vector<2x32xf32>
    %167 = arith.addf %165, %166 : vector<2x32xf32>
    %168 = math.tanh %167 : vector<2x32xf32>
    %169 = arith.mulf %162, %168 : vector<2x32xf32>
    %c8_i32 = arith.constant 8 : i32
    %c0_48 = arith.constant 0 : index
    %c0_49 = arith.constant 0 : index
    %170 = vector.load %arg2[%c0_48, %c0_49] : memref<1x32xf32, #tpu.memory_space<vmem>>, vector<1x32xf32>
    %171 = vector.broadcast %170 : vector<1x32xf32> to vector<2x32xf32>
    %172 = arith.mulf %169, %171 : vector<2x32xf32>
    %cst_50 = arith.constant dense<0.000000e+00> : vector<2xf32>
    %173 = vector.multi_reduction <add>, %172, %cst_50 [1] : vector<2x32xf32> to vector<2xf32>
    %174 = vector.shape_cast %173 : vector<2xf32> to vector<2x1xf32>
    %c0_51 = arith.constant 0 : index
    %c0_52 = arith.constant 0 : index
    %175 = vector.load %arg3[%c0_51, %c0_52] : memref<1x1xf32, #tpu.memory_space<vmem>>, vector<1x1xf32>
    %176 = vector.broadcast %175 : vector<1x1xf32> to vector<2x1xf32>
    %177 = arith.addf %174, %176 : vector<2x1xf32>
    %c0_53 = arith.constant 0 : index
    %c0_54 = arith.constant 0 : index
    %178 = vector.load %arg4[%c0_53, %c0_54] : memref<2x1xf32, #tpu.memory_space<vmem>>, vector<2x1xf32>
    tpu.vector_store %arg4[%c0_53, %c0_54], %177 {strides = array<i32>} : memref<2x1xf32, #tpu.memory_space<vmem>>, vector<2x1xf32>,
    return
  }
}

</mosaic_0001>

<llo_original>
// kernel: tpu_custom_call.1
$region0: #{tpu_custom_call.1}
  #allocation0 [shape = 'u32[]', space=smem, size = 0x4, offset = 0x4, fixed_abs, tag = 'smem constant byte address 0x4 - core index']
  #allocation1 [shape = 'u32[144,128]{1,0:T(1,128)}', space=vmem, size = 0x12000, scoped, tag = 'internal scratch']
  #allocation2 [shape = 'f32[1,1]{1,0:T(1,128)S(1)}', space=vmem, size = 0x200, scoped, tag = 'scoped memory for tpu_custom_call.1']
  %s0 = inlined_call_operand.hbm [shape: f32[8,2,128], index: 0, kind: input, shape index: {}]
  %s1 = inlined_call_operand.hbm [shape: f32[32,128], index: 1, kind: input, shape index: {}]
  %s2 = inlined_call_operand.vmem [shape: f32[1,32], index: 2, kind: input, shape index: {}]
  %s3 = inlined_call_operand.<no memory space> [shape: f32[1,1], index: 3, kind: input, shape index: {}]
  %s4 = inlined_call_operand.vmem [shape: f32[2,1], index: 4, kind: output, shape index: {}]
  %s5 = sld [smem:[#allocation0]]
  $region34: #{tpu_custom_call.1} parent=0
    _
  %s7 = ssub.s32 1, %s5
  %s8 = scalar_select 0, %s7, %s5
  %v9 = vstv %s3
  %10 = vst [vmem:[#allocation2] sm:$0x1] %v9
  $region1: #{tpu_custom_call.1} parent=0
    #allocation3 [shape = 'u8[8192]{0}', space=vmem, size = 0x2000, scoped, tag = 'input window, operand 0, single buffered']
    #allocation4 [shape = 's32[1]{0}', space=sflag, size = 0x4, scoped, tag = 'scoped memory for tpu_custom_call.1']
    #allocation5 [shape = 'u8[16384]{0}', space=vmem, size = 0x4000, scoped, tag = 'input window, operand 1, single buffered']
    #allocation6 [shape = 's32[1]{0}', space=sflag, size = 0x4, scoped, tag = 'scoped memory for tpu_custom_call.1']
    %11 = vsyncpa [#allocation4], 0
    %12 = vsyncpa [#allocation6], 0
    // Predicated region
    $region2: #{tpu_custom_call.1} parent=1 // pred_check
      _
    $region3: #{tpu_custom_call.1} parent=1 // pred_check_branch
      %14 = sbr.rel (0) target = $region5
    $region4: #{tpu_custom_call.1} parent=1 // pred_region
      %s16 = ssub.s32 256, 256
      %17 = vsyncadd [#allocation4], %s16
      %s18 = sshll.u32 [#allocation3], 4
      %s19 = int_to_ptr.vmem [resolvable:$true] %s18
      %24 = dma.hbm_to_vmem [thread:$0]  %s0, 256, %s19, [#allocation4], 32, 32, 2
    $region5: #{tpu_custom_call.1} parent=1 // pred_fallthru
      _
    // Predicated region
    $region6: #{tpu_custom_call.1} parent=1 // pred_check
      _
    $region7: #{tpu_custom_call.1} parent=1 // pred_check_branch
      %26 = sbr.rel (0) target = $region9
    $region8: #{tpu_custom_call.1} parent=1 // pred_region
      %s28 = ssub.s32 512, 512
      %29 = vsyncadd [#allocation6], %s28
      %s30 = sshll.u32 [#allocation5], 4
      %s31 = int_to_ptr.vmem [resolvable:$true] %s30
      %36 = dma.hbm_to_vmem [thread:$0]  %s1, 512, %s31, [#allocation6], 128, 128, 8
    $region9: #{tpu_custom_call.1} parent=1 // pred_fallthru
      _
    // Predicated region
    $region10: #{tpu_custom_call.1} parent=1 // pred_check
      _
    $region11: #{tpu_custom_call.1} parent=1 // pred_check_branch
      %38 = sbr.rel (0) target = $region13
    $region12: #{tpu_custom_call.1} parent=1 // pred_region
      _
    $region13: #{tpu_custom_call.1} parent=1 // pred_fallthru
      _
    // Predicated region
    $region14: #{tpu_custom_call.1} parent=1 // pred_check
      _
    $region15: #{tpu_custom_call.1} parent=1 // pred_check_branch
      %40 = sbr.rel (0) target = $region17
    $region16: #{tpu_custom_call.1} parent=1 // pred_region
      _
    $region17: #{tpu_custom_call.1} parent=1 // pred_fallthru
      _
    // Predicated region
    $region18: #{tpu_custom_call.1} parent=1 // pred_check
      _
    $region19: #{tpu_custom_call.1} parent=1 // pred_check_branch
      %42 = sbr.rel (0) target = $region21
    $region20: #{tpu_custom_call.1} parent=1 // pred_region
      %43 = dma.done [#allocation4], 256
    $region21: #{tpu_custom_call.1} parent=1 // pred_fallthru
      _
    // Predicated region
    $region22: #{tpu_custom_call.1} parent=1 // pred_check
      _
    $region23: #{tpu_custom_call.1} parent=1 // pred_check_branch
      %45 = sbr.rel (0) target = $region25
    $region24: #{tpu_custom_call.1} parent=1 // pred_region
      %46 = dma.done [#allocation6], 512
    $region25: #{tpu_custom_call.1} parent=1 // pred_fallthru
      _
    %v47 = vld [vmem:[#allocation3] sm:$0x3]
    %v48 = vld [vmem:[#allocation5] sm:$0xff]
    %v49 = vld [vmem:[#allocation5 + $0x8] sm:$0xff]
    %v50 = vld [vmem:[#allocation5 + $0x10] sm:$0xff]
    %v51 = vld [vmem:[#allocation5 + $0x18] sm:$0xff]
    %vm52 = vcmask 261120
    %v54 = vsel %vm52, 0.0, 0
    %56 = vmatprep.subr.mxu0 0.0
    %57 = vmatpush1.msra.mxu0 %v48
    %58 = vmatprep.subr.mxu0 0.0
    %59 = vmatpush1.msra.mxu0 %v49
    %60 = vmatprep.subr.mxu0 0.0
    %61 = vmatpush1.msra.mxu0 %v50
    %62 = vmatprep.subr.mxu0 0.0
    %63 = vmatpush1.msra.mxu0 %v51
    %64 = vmatprep.subr.mxu0 0.0
    %65 = vmatpush1.msra.mxu0 0.0
    %66 = vmatprep.subr.mxu0 0.0
    %67 = vmatpush1.msra.mxu0 0.0
    %68 = vmatprep.subr.mxu0 0.0
    %69 = vmatpush1.msra.mxu0 0.0
    %70 = vmatprep.subr.mxu0 0.0
    %71 = vmatpush1.msra.mxu0 0.0
    %72 = vmatprep.subr.mxu0 0.0
    %73 = vmatpush1.msra.mxu0 0.0
    %74 = vmatprep.subr.mxu0 0.0
    %75 = vmatpush1.msra.mxu0 0.0
    %76 = vmatprep.subr.mxu0 0.0
    %77 = vmatpush1.msra.mxu0 0.0
    %78 = vmatprep.subr.mxu0 0.0
    %79 = vmatpush1.msra.mxu0 0.0
    %80 = vmatprep.subr.mxu0 0.0
    %81 = vmatpush1.msra.mxu0 0.0
    %82 = vmatprep.subr.mxu0 0.0
    %83 = vmatpush1.msra.mxu0 0.0
    %84 = vmatprep.subr.mxu0 0.0
    %85 = vmatpush1.msra.mxu0 0.0
    %86 = vmatprep.subr.mxu0 0.0
    %87 = vmatpush1.msra.mxu0 0.0
    %88 = vmatprep.subr.mxu0 0.0
    %89 = vmatpush1.msra.mxu0 0.0
    %90 = vmatprep.subr.mxu0 0.0
    %91 = vmatpush1.msra.mxu0 0.0
    %92 = vmatprep.subr.mxu0 0.0
    %93 = vmatpush1.msra.mxu0 0.0
    %94 = vmatprep.subr.mxu0 0.0
    %95 = vmatpush1.msra.mxu0 0.0
    %96 = vmatprep.subr.mxu0 0.0
    %97 = vmatpush1.msra.mxu0 0.0
    %98 = vmatprep.subr.mxu0 0.0
    %99 = vmatpush1.msra.mxu0 0.0
    %100 = vmatprep.subr.mxu0 0.0
    %101 = vmatpush1.msra.mxu0 0.0
    %102 = vmatprep.subr.mxu0 0.0
    %103 = vmatpush1.msra.mxu0 0.0
    %104 = vmatprep.subr.mxu0 0.0
    %105 = vmatpush1.msra.mxu0 0.0
    %106 = vmatprep.subr.mxu0 0.0
    %107 = vmatpush1.msra.mxu0 0.0
    %108 = vmatprep.subr.mxu0 0.0
    %109 = vmatpush1.msra.mxu0 0.0
    %110 = vmatprep.subr.mxu0 0.0
    %111 = vmatpush1.msra.mxu0 0.0
    %112 = vmatprep.subr.mxu0 0.0
    %113 = vmatpush1.msra.mxu0 0.0
    %114 = vmatprep.subr.mxu0 0.0
    %115 = vmatpush1.msra.mxu0 0.0
    %116 = vmatprep.subr.mxu0 0.0
    %117 = vmatpush1.msra.mxu0 0.0
    %118 = vmatprep.subr.mxu0 0.0
    %119 = vmatpush1.msra.mxu0 0.0
    %120 = vmatprep.mubr.f32.mxu0 0.0
    %121 = vmatmul.mubr.f32.gmra.mrb[0].mxu0 %v54
    %v122 = vpop.f32.mrb[0].mxu0
    %v123 = vadd.f32 0.0, %v122
    %v124 = vpop.f32.mrb[0].mxu0
    %125 = vdwg.mxu0
    %v126 = vadd.f32 %v47, %v123
    %v127 = vxor.u32 %v126, 2147483648
    %v128 = vmul.f32 %v127, 1.442695
    %v129 = vpow.pop %v128
    %v130 = vadd.f32 %v129, 1.0
    %v131 = vrcp.pop %v130
    %v132 = vmul.f32 1.0, %v131
    %v133 = vtanh.pop %v126
    %v134 = vmul.f32 %v132, 0.0
    %136 = vrot.lane.b32.xlu0 %v133, 64
    %v137 = vpop.permute.xlu0 %136
    %v139 = vmul.f32 %v132, %v137
    %141 = vrot.lane.b32.xlu0 %v139, 32
    %v142 = vpop.permute.xlu0 %141
    %v144 = vadd.f32 %v134, %v142
    %v145 = vtanh.pop %v144
    %147 = vrot.lane.b32.xlu0 %v145, 64
    %v148 = vpop.permute.xlu0 %147
    %v150 = vmul.f32 %v132, %v148
    %s151 = scalar_lea.vmem [#allocation3], 2
    %v152 = vld [vmem:[%s151] sm:$0x3]
    %154 = vrot.lane.b32.xlu0 %v150, 32
    %v155 = vpop.permute.xlu0 %154
    %v156 = vsel %vm52, %v155, 0
    %158 = vmatprep.subr.mxu0 0.0
    %159 = vmatpush1.msra.mxu0 %v48
    %160 = vmatprep.subr.mxu0 0.0
    %161 = vmatpush1.msra.mxu0 %v49
    %162 = vmatprep.subr.mxu0 0.0
    %163 = vmatpush1.msra.mxu0 %v50
    %164 = vmatprep.subr.mxu0 0.0
    %165 = vmatpush1.msra.mxu0 %v51
    %166 = vmatprep.subr.mxu0 0.0
    %167 = vmatpush1.msra.mxu0 0.0
    %168 = vmatprep.subr.mxu0 0.0
    %169 = vmatpush1.msra.mxu0 0.0
    %170 = vmatprep.subr.mxu0 0.0
    %171 = vmatpush1.msra.mxu0 0.0
    %172 = vmatprep.subr.mxu0 0.0
    %173 = vmatpush1.msra.mxu0 0.0
    %174 = vmatprep.subr.mxu0 0.0
    %175 = vmatpush1.msra.mxu0 0.0
    %176 = vmatprep.subr.mxu0 0.0
    %177 = vmatpush1.msra.mxu0 0.0
    %178 = vmatprep.subr.mxu0 0.0
    %179 = vmatpush1.msra.mxu0 0.0
    %180 = vmatprep.subr.mxu0 0.0
    %181 = vmatpush1.msra.mxu0 0.0
    %182 = vmatprep.subr.mxu0 0.0
    %183 = vmatpush1.msra.mxu0 0.0
    %184 = vmatprep.subr.mxu0 0.0
    %185 = vmatpush1.msra.mxu0 0.0
    %186 = vmatprep.subr.mxu0 0.0
    %187 = vmatpush1.msra.mxu0 0.0
    %188 = vmatprep.subr.mxu0 0.0
    %189 = vmatpush1.msra.mxu0 0.0
    %190 = vmatprep.subr.mxu0 0.0
    %191 = vmatpush1.msra.mxu0 0.0
    %192 = vmatprep.subr.mxu0 0.0
    %193 = vmatpush1.msra.mxu0 0.0
    %194 = vmatprep.subr.mxu0 0.0
    %195 = vmatpush1.msra.mxu0 0.0
    %196 = vmatprep.subr.mxu0 0.0
    %197 = vmatpush1.msra.mxu0 0.0
    %198 = vmatprep.subr.mxu0 0.0
    %199 = vmatpush1.msra.mxu0 0.0
    %200 = vmatprep.subr.mxu0 0.0
    %201 = vmatpush1.msra.mxu0 0.0
    %202 = vmatprep.subr.mxu0 0.0
    %203 = vmatpush1.msra.mxu0 0.0
    %204 = vmatprep.subr.mxu0 0.0
    %205 = vmatpush1.msra.mxu0 0.0
    %206 = vmatprep.subr.mxu0 0.0
    %207 = vmatpush1.msra.mxu0 0.0
    %208 = vmatprep.subr.mxu0 0.0
    %209 = vmatpush1.msra.mxu0 0.0
    %210 = vmatprep.subr.mxu0 0.0
    %211 = vmatpush1.msra.mxu0 0.0
    %212 = vmatprep.subr.mxu0 0.0
    %213 = vmatpush1.msra.mxu0 0.0
    %214 = vmatprep.subr.mxu0 0.0
    %215 = vmatpush1.msra.mxu0 0.0
    %216 = vmatprep.subr.mxu0 0.0
    %217 = vmatpush1.msra.mxu0 0.0
    %218 = vmatprep.subr.mxu0 0.0
    %219 = vmatpush1.msra.mxu0 0.0
    %220 = vmatprep.subr.mxu0 0.0
    %221 = vmatpush1.msra.mxu0 0.0
    %222 = vmatprep.mubr.f32.mxu0 0.0
    %223 = vmatmul.mubr.f32.gmra.mrb[0].mxu0 %v156
    %v224 = vpop.f32.mrb[0].mxu0
    %v225 = vadd.f32 0.0, %v224
    %v226 = vpop.f32.mrb[0].mxu0
    %227 = vdwg.mxu0
    %v228 = vadd.f32 %v152, %v225
    %v229 = vxor.u32 %v228, 2147483648
    %v230 = vmul.f32 %v229, 1.442695
    %v231 = vpow.pop %v230
    %v232 = vadd.f32 %v231, 1.0
    %v233 = vrcp.pop %v232
    %v234 = vmul.f32 1.0, %v233
    %v235 = vtanh.pop %v228
    %v236 = vmul.f32 %v234, %v144
    %238 = vrot.lane.b32.xlu0 %v235, 64
    %v239 = vpop.permute.xlu0 %238
    %v241 = vmul.f32 %v234, %v239
    %243 = vrot.lane.b32.xlu0 %v241, 32
    %v244 = vpop.permute.xlu0 %243
    %v246 = vadd.f32 %v236, %v244
    %v247 = vtanh.pop %v246
    %249 = vrot.lane.b32.xlu0 %v247, 64
    %v250 = vpop.permute.xlu0 %249
    %v252 = vmul.f32 %v234, %v250
    %s253 = scalar_lea.vmem [#allocation3], 4
    %v254 = vld [vmem:[%s253] sm:$0x3]
    %256 = vrot.lane.b32.xlu0 %v252, 32
    %v257 = vpop.permute.xlu0 %256
    %v258 = vsel %vm52, %v257, 0
    %260 = vmatprep.subr.mxu0 0.0
    %261 = vmatpush1.msra.mxu0 %v48
    %262 = vmatprep.subr.mxu0 0.0
    %263 = vmatpush1.msra.mxu0 %v49
    %264 = vmatprep.subr.mxu0 0.0
    %265 = vmatpush1.msra.mxu0 %v50
    %266 = vmatprep.subr.mxu0 0.0
    %267 = vmatpush1.msra.mxu0 %v51
    %268 = vmatprep.subr.mxu0 0.0
    %269 = vmatpush1.msra.mxu0 0.0
    %270 = vmatprep.subr.mxu0 0.0
    %271 = vmatpush1.msra.mxu0 0.0
    %272 = vmatprep.subr.mxu0 0.0
    %273 = vmatpush1.msra.mxu0 0.0
    %274 = vmatprep.subr.mxu0 0.0
    %275 = vmatpush1.msra.mxu0 0.0
    %276 = vmatprep.subr.mxu0 0.0
    %277 = vmatpush1.msra.mxu0 0.0
    %278 = vmatprep.subr.mxu0 0.0
    %279 = vmatpush1.msra.mxu0 0.0
    %280 = vmatprep.subr.mxu0 0.0
    %281 = vmatpush1.msra.mxu0 0.0
    %282 = vmatprep.subr.mxu0 0.0
    %283 = vmatpush1.msra.mxu0 0.0
    %284 = vmatprep.subr.mxu0 0.0
    %285 = vmatpush1.msra.mxu0 0.0
    %286 = vmatprep.subr.mxu0 0.0
    %287 = vmatpush1.msra.mxu0 0.0
    %288 = vmatprep.subr.mxu0 0.0
    %289 = vmatpush1.msra.mxu0 0.0
    %290 = vmatprep.subr.mxu0 0.0
    %291 = vmatpush1.msra.mxu0 0.0
    %292 = vmatprep.subr.mxu0 0.0
    %293 = vmatpush1.msra.mxu0 0.0
    %294 = vmatprep.subr.mxu0 0.0
    %295 = vmatpush1.msra.mxu0 0.0
    %296 = vmatprep.subr.mxu0 0.0
    %297 = vmatpush1.msra.mxu0 0.0
    %298 = vmatprep.subr.mxu0 0.0
    %299 = vmatpush1.msra.mxu0 0.0
    %300 = vmatprep.subr.mxu0 0.0
    %301 = vmatpush1.msra.mxu0 0.0
    %302 = vmatprep.subr.mxu0 0.0
    %303 = vmatpush1.msra.mxu0 0.0
    %304 = vmatprep.subr.mxu0 0.0
    %305 = vmatpush1.msra.mxu0 0.0
    %306 = vmatprep.subr.mxu0 0.0
    %307 = vmatpush1.msra.mxu0 0.0
    %308 = vmatprep.subr.mxu0 0.0
    %309 = vmatpush1.msra.mxu0 0.0
    %310 = vmatprep.subr.mxu0 0.0
    %311 = vmatpush1.msra.mxu0 0.0
    %312 = vmatprep.subr.mxu0 0.0
    %313 = vmatpush1.msra.mxu0 0.0
    %314 = vmatprep.subr.mxu0 0.0
    %315 = vmatpush1.msra.mxu0 0.0
    %316 = vmatprep.subr.mxu0 0.0
    %317 = vmatpush1.msra.mxu0 0.0
    %318 = vmatprep.subr.mxu0 0.0
    %319 = vmatpush1.msra.mxu0 0.0
    %320 = vmatprep.subr.mxu0 0.0
    %321 = vmatpush1.msra.mxu0 0.0
    %322 = vmatprep.subr.mxu0 0.0
    %323 = vmatpush1.msra.mxu0 0.0
    %324 = vmatprep.mubr.f32.mxu0 0.0
    %325 = vmatmul.mubr.f32.gmra.mrb[0].mxu0 %v258
    %v326 = vpop.f32.mrb[0].mxu0
    %v327 = vadd.f32 0.0, %v326
    %v328 = vpop.f32.mrb[0].mxu0
    %329 = vdwg.mxu0
    %v330 = vadd.f32 %v254, %v327
    %v331 = vxor.u32 %v330, 2147483648
    %v332 = vmul.f32 %v331, 1.442695
    %v333 = vpow.pop %v332
    %v334 = vadd.f32 %v333, 1.0
    %v335 = vrcp.pop %v334
    %v336 = vmul.f32 1.0, %v335
    %v337 = vtanh.pop %v330
    %v338 = vmul.f32 %v336, %v246
    %340 = vrot.lane.b32.xlu0 %v337, 64
    %v341 = vpop.permute.xlu0 %340
    %v343 = vmul.f32 %v336, %v341
    %345 = vrot.lane.b32.xlu0 %v343, 32
    %v346 = vpop.permute.xlu0 %345
    %v348 = vadd.f32 %v338, %v346
    %v349 = vtanh.pop %v348
    %351 = vrot.lane.b32.xlu0 %v349, 64
    %v352 = vpop.permute.xlu0 %351
    %v354 = vmul.f32 %v336, %v352
    %s355 = scalar_lea.vmem [#allocation3], 6
    %v356 = vld [vmem:[%s355] sm:$0x3]
    %358 = vrot.lane.b32.xlu0 %v354, 32
    %v359 = vpop.permute.xlu0 %358
    %v360 = vsel %vm52, %v359, 0
    %362 = vmatprep.subr.mxu0 0.0
    %363 = vmatpush1.msra.mxu0 %v48
    %364 = vmatprep.subr.mxu0 0.0
    %365 = vmatpush1.msra.mxu0 %v49
    %366 = vmatprep.subr.mxu0 0.0
    %367 = vmatpush1.msra.mxu0 %v50
    %368 = vmatprep.subr.mxu0 0.0
    %369 = vmatpush1.msra.mxu0 %v51
    %370 = vmatprep.subr.mxu0 0.0
    %371 = vmatpush1.msra.mxu0 0.0
    %372 = vmatprep.subr.mxu0 0.0
    %373 = vmatpush1.msra.mxu0 0.0
    %374 = vmatprep.subr.mxu0 0.0
    %375 = vmatpush1.msra.mxu0 0.0
    %376 = vmatprep.subr.mxu0 0.0
    %377 = vmatpush1.msra.mxu0 0.0
    %378 = vmatprep.subr.mxu0 0.0
    %379 = vmatpush1.msra.mxu0 0.0
    %380 = vmatprep.subr.mxu0 0.0
    %381 = vmatpush1.msra.mxu0 0.0
    %382 = vmatprep.subr.mxu0 0.0
    %383 = vmatpush1.msra.mxu0 0.0
    %384 = vmatprep.subr.mxu0 0.0
    %385 = vmatpush1.msra.mxu0 0.0
    %386 = vmatprep.subr.mxu0 0.0
    %387 = vmatpush1.msra.mxu0 0.0
    %388 = vmatprep.subr.mxu0 0.0
    %389 = vmatpush1.msra.mxu0 0.0
    %390 = vmatprep.subr.mxu0 0.0
    %391 = vmatpush1.msra.mxu0 0.0
    %392 = vmatprep.subr.mxu0 0.0
    %393 = vmatpush1.msra.mxu0 0.0
    %394 = vmatprep.subr.mxu0 0.0
    %395 = vmatpush1.msra.mxu0 0.0
    %396 = vmatprep.subr.mxu0 0.0
    %397 = vmatpush1.msra.mxu0 0.0
    %398 = vmatprep.subr.mxu0 0.0
    %399 = vmatpush1.msra.mxu0 0.0
    %400 = vmatprep.subr.mxu0 0.0
    %401 = vmatpush1.msra.mxu0 0.0
    %402 = vmatprep.subr.mxu0 0.0
    %403 = vmatpush1.msra.mxu0 0.0
    %404 = vmatprep.subr.mxu0 0.0
    %405 = vmatpush1.msra.mxu0 0.0
    %406 = vmatprep.subr.mxu0 0.0
    %407 = vmatpush1.msra.mxu0 0.0
    %408 = vmatprep.subr.mxu0 0.0
    %409 = vmatpush1.msra.mxu0 0.0
    %410 = vmatprep.subr.mxu0 0.0
    %411 = vmatpush1.msra.mxu0 0.0
    %412 = vmatprep.subr.mxu0 0.0
    %413 = vmatpush1.msra.mxu0 0.0
    %414 = vmatprep.subr.mxu0 0.0
    %415 = vmatpush1.msra.mxu0 0.0
    %416 = vmatprep.subr.mxu0 0.0
    %417 = vmatpush1.msra.mxu0 0.0
    %418 = vmatprep.subr.mxu0 0.0
    %419 = vmatpush1.msra.mxu0 0.0
    %420 = vmatprep.subr.mxu0 0.0
    %421 = vmatpush1.msra.mxu0 0.0
    %422 = vmatprep.subr.mxu0 0.0
    %423 = vmatpush1.msra.mxu0 0.0
    %424 = vmatprep.subr.mxu0 0.0
    %425 = vmatpush1.msra.mxu0 0.0
    %426 = vmatprep.mubr.f32.mxu0 0.0
    %427 = vmatmul.mubr.f32.gmra.mrb[0].mxu0 %v360
    %v428 = vpop.f32.mrb[0].mxu0
    %v429 = vadd.f32 0.0, %v428
    %v430 = vpop.f32.mrb[0].mxu0
    %431 = vdwg.mxu0
    %v432 = vadd.f32 %v356, %v429
    %v433 = vxor.u32 %v432, 2147483648
    %v434 = vmul.f32 %v433, 1.442695
    %v435 = vpow.pop %v434
    %v436 = vadd.f32 %v435, 1.0
    %v437 = vrcp.pop %v436
    %v438 = vmul.f32 1.0, %v437
    %v439 = vtanh.pop %v432
    %v440 = vmul.f32 %v438, %v348
    %442 = vrot.lane.b32.xlu0 %v439, 64
    %v443 = vpop.permute.xlu0 %442
    %v445 = vmul.f32 %v438, %v443
    %447 = vrot.lane.b32.xlu0 %v445, 32
    %v448 = vpop.permute.xlu0 %447
    %v450 = vadd.f32 %v440, %v448
    %v451 = vtanh.pop %v450
    %453 = vrot.lane.b32.xlu0 %v451, 64
    %v454 = vpop.permute.xlu0 %453
    %v456 = vmul.f32 %v438, %v454
    %s457 = scalar_lea.vmem [#allocation3], 8
    %v458 = vld [vmem:[%s457] sm:$0x3]
    %460 = vrot.lane.b32.xlu0 %v456, 32
    %v461 = vpop.permute.xlu0 %460
    %v462 = vsel %vm52, %v461, 0
    %464 = vmatprep.subr.mxu0 0.0
    %465 = vmatpush1.msra.mxu0 %v48
    %466 = vmatprep.subr.mxu0 0.0
    %467 = vmatpush1.msra.mxu0 %v49
    %468 = vmatprep.subr.mxu0 0.0
    %469 = vmatpush1.msra.mxu0 %v50
    %470 = vmatprep.subr.mxu0 0.0
    %471 = vmatpush1.msra.mxu0 %v51
    %472 = vmatprep.subr.mxu0 0.0
    %473 = vmatpush1.msra.mxu0 0.0
    %474 = vmatprep.subr.mxu0 0.0
    %475 = vmatpush1.msra.mxu0 0.0
    %476 = vmatprep.subr.mxu0 0.0
    %477 = vmatpush1.msra.mxu0 0.0
    %478 = vmatprep.subr.mxu0 0.0
    %479 = vmatpush1.msra.mxu0 0.0
    %480 = vmatprep.subr.mxu0 0.0
    %481 = vmatpush1.msra.mxu0 0.0
    %482 = vmatprep.subr.mxu0 0.0
    %483 = vmatpush1.msra.mxu0 0.0
    %484 = vmatprep.subr.mxu0 0.0
    %485 = vmatpush1.msra.mxu0 0.0
    %486 = vmatprep.subr.mxu0 0.0
    %487 = vmatpush1.msra.mxu0 0.0
    %488 = vmatprep.subr.mxu0 0.0
    %489 = vmatpush1.msra.mxu0 0.0
    %490 = vmatprep.subr.mxu0 0.0
    %491 = vmatpush1.msra.mxu0 0.0
    %492 = vmatprep.subr.mxu0 0.0
    %493 = vmatpush1.msra.mxu0 0.0
    %494 = vmatprep.subr.mxu0 0.0
    %495 = vmatpush1.msra.mxu0 0.0
    %496 = vmatprep.subr.mxu0 0.0
    %497 = vmatpush1.msra.mxu0 0.0
    %498 = vmatprep.subr.mxu0 0.0
    %499 = vmatpush1.msra.mxu0 0.0
    %500 = vmatprep.subr.mxu0 0.0
    %501 = vmatpush1.msra.mxu0 0.0
    %502 = vmatprep.subr.mxu0 0.0
    %503 = vmatpush1.msra.mxu0 0.0
    %504 = vmatprep.subr.mxu0 0.0
    %505 = vmatpush1.msra.mxu0 0.0
    %506 = vmatprep.subr.mxu0 0.0
    %507 = vmatpush1.msra.mxu0 0.0
    %508 = vmatprep.subr.mxu0 0.0
    %509 = vmatpush1.msra.mxu0 0.0
    %510 = vmatprep.subr.mxu0 0.0
    %511 = vmatpush1.msra.mxu0 0.0
    %512 = vmatprep.subr.mxu0 0.0
    %513 = vmatpush1.msra.mxu0 0.0
    %514 = vmatprep.subr.mxu0 0.0
    %515 = vmatpush1.msra.mxu0 0.0
    %516 = vmatprep.subr.mxu0 0.0
    %517 = vmatpush1.msra.mxu0 0.0
    %518 = vmatprep.subr.mxu0 0.0
    %519 = vmatpush1.msra.mxu0 0.0
    %520 = vmatprep.subr.mxu0 0.0
    %521 = vmatpush1.msra.mxu0 0.0
    %522 = vmatprep.subr.mxu0 0.0
    %523 = vmatpush1.msra.mxu0 0.0
    %524 = vmatprep.subr.mxu0 0.0
    %525 = vmatpush1.msra.mxu0 0.0
    %526 = vmatprep.subr.mxu0 0.0
    %527 = vmatpush1.msra.mxu0 0.0
    %528 = vmatprep.mubr.f32.mxu0 0.0
    %529 = vmatmul.mubr.f32.gmra.mrb[0].mxu0 %v462
    %v530 = vpop.f32.mrb[0].mxu0
    %v531 = vadd.f32 0.0, %v530
    %v532 = vpop.f32.mrb[0].mxu0
    %533 = vdwg.mxu0
    %v534 = vadd.f32 %v458, %v531
    %v535 = vxor.u32 %v534, 2147483648
    %v536 = vmul.f32 %v535, 1.442695
    %v537 = vpow.pop %v536
    %v538 = vadd.f32 %v537, 1.0
    %v539 = vrcp.pop %v538
    %v540 = vmul.f32 1.0, %v539
    %v541 = vtanh.pop %v534
    %v542 = vmul.f32 %v540, %v450
    %544 = vrot.lane.b32.xlu0 %v541, 64
    %v545 = vpop.permute.xlu0 %544
    %v547 = vmul.f32 %v540, %v545
    %549 = vrot.lane.b32.xlu0 %v547, 32
    %v550 = vpop.permute.xlu0 %549
    %v552 = vadd.f32 %v542, %v550
    %v553 = vtanh.pop %v552
    %555 = vrot.lane.b32.xlu0 %v553, 64
    %v556 = vpop.permute.xlu0 %555
    %v558 = vmul.f32 %v540, %v556
    %s559 = scalar_lea.vmem [#allocation3], 10
    %v560 = vld [vmem:[%s559] sm:$0x3]
    %562 = vrot.lane.b32.xlu0 %v558, 32
    %v563 = vpop.permute.xlu0 %562
    %v564 = vsel %vm52, %v563, 0
    %566 = vmatprep.subr.mxu0 0.0
    %567 = vmatpush1.msra.mxu0 %v48
    %568 = vmatprep.subr.mxu0 0.0
    %569 = vmatpush1.msra.mxu0 %v49
    %570 = vmatprep.subr.mxu0 0.0
    %571 = vmatpush1.msra.mxu0 %v50
    %572 = vmatprep.subr.mxu0 0.0
    %573 = vmatpush1.msra.mxu0 %v51
    %574 = vmatprep.subr.mxu0 0.0
    %575 = vmatpush1.msra.mxu0 0.0
    %576 = vmatprep.subr.mxu0 0.0
    %577 = vmatpush1.msra.mxu0 0.0
    %578 = vmatprep.subr.mxu0 0.0
    %579 = vmatpush1.msra.mxu0 0.0
    %580 = vmatprep.subr.mxu0 0.0
    %581 = vmatpush1.msra.mxu0 0.0
    %582 = vmatprep.subr.mxu0 0.0
    %583 = vmatpush1.msra.mxu0 0.0
    %584 = vmatprep.subr.mxu0 0.0
    %585 = vmatpush1.msra.mxu0 0.0
    %586 = vmatprep.subr.mxu0 0.0
    %587 = vmatpush1.msra.mxu0 0.0
    %588 = vmatprep.subr.mxu0 0.0
    %589 = vmatpush1.msra.mxu0 0.0
    %590 = vmatprep.subr.mxu0 0.0
    %591 = vmatpush1.msra.mxu0 0.0
    %592 = vmatprep.subr.mxu0 0.0
    %593 = vmatpush1.msra.mxu0 0.0
    %594 = vmatprep.subr.mxu0 0.0
    %595 = vmatpush1.msra.mxu0 0.0
    %596 = vmatprep.subr.mxu0 0.0
    %597 = vmatpush1.msra.mxu0 0.0
    %598 = vmatprep.subr.mxu0 0.0
    %599 = vmatpush1.msra.mxu0 0.0
    %600 = vmatprep.subr.mxu0 0.0
    %601 = vmatpush1.msra.mxu0 0.0
    %602 = vmatprep.subr.mxu0 0.0
    %603 = vmatpush1.msra.mxu0 0.0
    %604 = vmatprep.subr.mxu0 0.0
    %605 = vmatpush1.msra.mxu0 0.0
    %606 = vmatprep.subr.mxu0 0.0
    %607 = vmatpush1.msra.mxu0 0.0
    %608 = vmatprep.subr.mxu0 0.0
    %609 = vmatpush1.msra.mxu0 0.0
    %610 = vmatprep.subr.mxu0 0.0
    %611 = vmatpush1.msra.mxu0 0.0
    %612 = vmatprep.subr.mxu0 0.0
    %613 = vmatpush1.msra.mxu0 0.0
    %614 = vmatprep.subr.mxu0 0.0
    %615 = vmatpush1.msra.mxu0 0.0
    %616 = vmatprep.subr.mxu0 0.0
    %617 = vmatpush1.msra.mxu0 0.0
    %618 = vmatprep.subr.mxu0 0.0
    %619 = vmatpush1.msra.mxu0 0.0
    %620 = vmatprep.subr.mxu0 0.0
    %621 = vmatpush1.msra.mxu0 0.0
    %622 = vmatprep.subr.mxu0 0.0
    %623 = vmatpush1.msra.mxu0 0.0
    %624 = vmatprep.subr.mxu0 0.0
    %625 = vmatpush1.msra.mxu0 0.0
    %626 = vmatprep.subr.mxu0 0.0
    %627 = vmatpush1.msra.mxu0 0.0
    %628 = vmatprep.subr.mxu0 0.0
    %629 = vmatpush1.msra.mxu0 0.0
    %630 = vmatprep.mubr.f32.mxu0 0.0
    %631 = vmatmul.mubr.f32.gmra.mrb[0].mxu0 %v564
    %v632 = vpop.f32.mrb[0].mxu0
    %v633 = vadd.f32 0.0, %v632
    %v634 = vpop.f32.mrb[0].mxu0
    %635 = vdwg.mxu0
    %v636 = vadd.f32 %v560, %v633
    %v637 = vxor.u32 %v636, 2147483648
    %v638 = vmul.f32 %v637, 1.442695
    %v639 = vpow.pop %v638
    %v640 = vadd.f32 %v639, 1.0
    %v641 = vrcp.pop %v640
    %v642 = vmul.f32 1.0, %v641
    %v643 = vtanh.pop %v636
    %v644 = vmul.f32 %v642, %v552
    %646 = vrot.lane.b32.xlu0 %v643, 64
    %v647 = vpop.permute.xlu0 %646
    %v649 = vmul.f32 %v642, %v647
    %651 = vrot.lane.b32.xlu0 %v649, 32
    %v652 = vpop.permute.xlu0 %651
    %v654 = vadd.f32 %v644, %v652
    %v655 = vtanh.pop %v654
    %657 = vrot.lane.b32.xlu0 %v655, 64
    %v658 = vpop.permute.xlu0 %657
    %v660 = vmul.f32 %v642, %v658
    %s661 = scalar_lea.vmem [#allocation3], 12
    %v662 = vld [vmem:[%s661] sm:$0x3]
    %664 = vrot.lane.b32.xlu0 %v660, 32
    %v665 = vpop.permute.xlu0 %664
    %v666 = vsel %vm52, %v665, 0
    %668 = vmatprep.subr.mxu0 0.0
    %669 = vmatpush1.msra.mxu0 %v48
    %670 = vmatprep.subr.mxu0 0.0
    %671 = vmatpush1.msra.mxu0 %v49
    %672 = vmatprep.subr.mxu0 0.0
    %673 = vmatpush1.msra.mxu0 %v50
    %674 = vmatprep.subr.mxu0 0.0
    %675 = vmatpush1.msra.mxu0 %v51
    %676 = vmatprep.subr.mxu0 0.0
    %677 = vmatpush1.msra.mxu0 0.0
    %678 = vmatprep.subr.mxu0 0.0
    %679 = vmatpush1.msra.mxu0 0.0
    %680 = vmatprep.subr.mxu0 0.0
    %681 = vmatpush1.msra.mxu0 0.0
    %682 = vmatprep.subr.mxu0 0.0
    %683 = vmatpush1.msra.mxu0 0.0
    %684 = vmatprep.subr.mxu0 0.0
    %685 = vmatpush1.msra.mxu0 0.0
    %686 = vmatprep.subr.mxu0 0.0
    %687 = vmatpush1.msra.mxu0 0.0
    %688 = vmatprep.subr.mxu0 0.0
    %689 = vmatpush1.msra.mxu0 0.0
    %690 = vmatprep.subr.mxu0 0.0
    %691 = vmatpush1.msra.mxu0 0.0
    %692 = vmatprep.subr.mxu0 0.0
    %693 = vmatpush1.msra.mxu0 0.0
    %694 = vmatprep.subr.mxu0 0.0
    %695 = vmatpush1.msra.mxu0 0.0
    %696 = vmatprep.subr.mxu0 0.0
    %697 = vmatpush1.msra.mxu0 0.0
    %698 = vmatprep.subr.mxu0 0.0
    %699 = vmatpush1.msra.mxu0 0.0
    %700 = vmatprep.subr.mxu0 0.0
    %701 = vmatpush1.msra.mxu0 0.0
    %702 = vmatprep.subr.mxu0 0.0
    %703 = vmatpush1.msra.mxu0 0.0
    %704 = vmatprep.subr.mxu0 0.0
    %705 = vmatpush1.msra.mxu0 0.0
    %706 = vmatprep.subr.mxu0 0.0
    %707 = vmatpush1.msra.mxu0 0.0
    %708 = vmatprep.subr.mxu0 0.0
    %709 = vmatpush1.msra.mxu0 0.0
    %710 = vmatprep.subr.mxu0 0.0
    %711 = vmatpush1.msra.mxu0 0.0
    %712 = vmatprep.subr.mxu0 0.0
    %713 = vmatpush1.msra.mxu0 0.0
    %714 = vmatprep.subr.mxu0 0.0
    %715 = vmatpush1.msra.mxu0 0.0
    %716 = vmatprep.subr.mxu0 0.0
    %717 = vmatpush1.msra.mxu0 0.0
    %718 = vmatprep.subr.mxu0 0.0
    %719 = vmatpush1.msra.mxu0 0.0
    %720 = vmatprep.subr.mxu0 0.0
    %721 = vmatpush1.msra.mxu0 0.0
    %722 = vmatprep.subr.mxu0 0.0
    %723 = vmatpush1.msra.mxu0 0.0
    %724 = vmatprep.subr.mxu0 0.0
    %725 = vmatpush1.msra.mxu0 0.0
    %726 = vmatprep.subr.mxu0 0.0
    %727 = vmatpush1.msra.mxu0 0.0
    %728 = vmatprep.subr.mxu0 0.0
    %729 = vmatpush1.msra.mxu0 0.0
    %730 = vmatprep.subr.mxu0 0.0
    %731 = vmatpush1.msra.mxu0 0.0
    %732 = vmatprep.mubr.f32.mxu0 0.0
    %733 = vmatmul.mubr.f32.gmra.mrb[0].mxu0 %v666
    %v734 = vpop.f32.mrb[0].mxu0
    %v735 = vadd.f32 0.0, %v734
    %v736 = vpop.f32.mrb[0].mxu0
    %737 = vdwg.mxu0
    %v738 = vadd.f32 %v662, %v735
    %v739 = vxor.u32 %v738, 2147483648
    %v740 = vmul.f32 %v739, 1.442695
    %v741 = vpow.pop %v740
    %v742 = vadd.f32 %v741, 1.0
    %v743 = vrcp.pop %v742
    %v744 = vmul.f32 1.0, %v743
    %v745 = vtanh.pop %v738
    %v746 = vmul.f32 %v744, %v654
    %748 = vrot.lane.b32.xlu0 %v745, 64
    %v749 = vpop.permute.xlu0 %748
    %v751 = vmul.f32 %v744, %v749
    %753 = vrot.lane.b32.xlu0 %v751, 32
    %v754 = vpop.permute.xlu0 %753
    %v756 = vadd.f32 %v746, %v754
    %v757 = vtanh.pop %v756
    %759 = vrot.lane.b32.xlu0 %v757, 64
    %v760 = vpop.permute.xlu0 %759
    %v762 = vmul.f32 %v744, %v760
    %s763 = scalar_lea.vmem [#allocation3], 14
    %v764 = vld [vmem:[%s763] sm:$0x3]
    %766 = vrot.lane.b32.xlu0 %v762, 32
    %v767 = vpop.permute.xlu0 %766
    %v768 = vsel %vm52, %v767, 0
    %770 = vmatprep.subr.mxu0 0.0
    %771 = vmatpush1.msra.mxu0 %v48
    %772 = vmatprep.subr.mxu0 0.0
    %773 = vmatpush1.msra.mxu0 %v49
    %774 = vmatprep.subr.mxu0 0.0
    %775 = vmatpush1.msra.mxu0 %v50
    %776 = vmatprep.subr.mxu0 0.0
    %777 = vmatpush1.msra.mxu0 %v51
    %778 = vmatprep.subr.mxu0 0.0
    %779 = vmatpush1.msra.mxu0 0.0
    %780 = vmatprep.subr.mxu0 0.0
    %781 = vmatpush1.msra.mxu0 0.0
    %782 = vmatprep.subr.mxu0 0.0
    %783 = vmatpush1.msra.mxu0 0.0
    %784 = vmatprep.subr.mxu0 0.0
    %785 = vmatpush1.msra.mxu0 0.0
    %786 = vmatprep.subr.mxu0 0.0
    %787 = vmatpush1.msra.mxu0 0.0
    %788 = vmatprep.subr.mxu0 0.0
    %789 = vmatpush1.msra.mxu0 0.0
    %790 = vmatprep.subr.mxu0 0.0
    %791 = vmatpush1.msra.mxu0 0.0
    %792 = vmatprep.subr.mxu0 0.0
    %793 = vmatpush1.msra.mxu0 0.0
    %794 = vmatprep.subr.mxu0 0.0
    %795 = vmatpush1.msra.mxu0 0.0
    %796 = vmatprep.subr.mxu0 0.0
    %797 = vmatpush1.msra.mxu0 0.0
    %798 = vmatprep.subr.mxu0 0.0
    %799 = vmatpush1.msra.mxu0 0.0
    %800 = vmatprep.subr.mxu0 0.0
    %801 = vmatpush1.msra.mxu0 0.0
    %802 = vmatprep.subr.mxu0 0.0
    %803 = vmatpush1.msra.mxu0 0.0
    %804 = vmatprep.subr.mxu0 0.0
    %805 = vmatpush1.msra.mxu0 0.0
    %806 = vmatprep.subr.mxu0 0.0
    %807 = vmatpush1.msra.mxu0 0.0
    %808 = vmatprep.subr.mxu0 0.0
    %809 = vmatpush1.msra.mxu0 0.0
    %810 = vmatprep.subr.mxu0 0.0
    %811 = vmatpush1.msra.mxu0 0.0
    %812 = vmatprep.subr.mxu0 0.0
    %813 = vmatpush1.msra.mxu0 0.0
    %814 = vmatprep.subr.mxu0 0.0
    %815 = vmatpush1.msra.mxu0 0.0
    %816 = vmatprep.subr.mxu0 0.0
    %817 = vmatpush1.msra.mxu0 0.0
    %818 = vmatprep.subr.mxu0 0.0
    %819 = vmatpush1.msra.mxu0 0.0
    %820 = vmatprep.subr.mxu0 0.0
    %821 = vmatpush1.msra.mxu0 0.0
    %822 = vmatprep.subr.mxu0 0.0
    %823 = vmatpush1.msra.mxu0 0.0
    %824 = vmatprep.subr.mxu0 0.0
    %825 = vmatpush1.msra.mxu0 0.0
    %826 = vmatprep.subr.mxu0 0.0
    %827 = vmatpush1.msra.mxu0 0.0
    %828 = vmatprep.subr.mxu0 0.0
    %829 = vmatpush1.msra.mxu0 0.0
    %830 = vmatprep.subr.mxu0 0.0
    %831 = vmatpush1.msra.mxu0 0.0
    %832 = vmatprep.subr.mxu0 0.0
    %833 = vmatpush1.msra.mxu0 0.0
    %834 = vmatprep.mubr.f32.mxu0 0.0
    %835 = vmatmul.mubr.f32.gmra.mrb[0].mxu0 %v768
    %v836 = vpop.f32.mrb[0].mxu0
    %v837 = vadd.f32 0.0, %v836
    %v838 = vpop.f32.mrb[0].mxu0
    %839 = vdwg.mxu0
    %v840 = vadd.f32 %v764, %v837
    %v841 = vxor.u32 %v840, 2147483648
    %v842 = vmul.f32 %v841, 1.442695
    %v843 = vpow.pop %v842
    %v844 = vadd.f32 %v843, 1.0
    %v845 = vrcp.pop %v844
    %v846 = vmul.f32 1.0, %v845
    %v847 = vtanh.pop %v840
    %v848 = vmul.f32 %v846, %v756
    %850 = vrot.lane.b32.xlu0 %v847, 64
    %v851 = vpop.permute.xlu0 %850
    %v853 = vmul.f32 %v846, %v851
    %855 = vrot.lane.b32.xlu0 %v853, 32
    %v856 = vpop.permute.xlu0 %855
    %v858 = vadd.f32 %v848, %v856
    %v859 = vtanh.pop %v858
    %861 = vrot.lane.b32.xlu0 %v859, 64
    %v862 = vpop.permute.xlu0 %861
    %v864 = vmul.f32 %v846, %v862
    %v865 = vld [vmem:[%s2] sm:$0x1]
    %v867 = vlaneseq
    %v868 = vshrl.u32 %v867, 7
    %v869 = vsub.s32 0, %v868
    %v870 = vrot.slane %v865, %v869
    %871 = vrot.lane.b32.xlu0 %v870, 96
    %v872 = vpop.permute.xlu0 %871
    %v874 = vmul.f32 %v864, %v872
    %876 = vrot.lane.b32.xlu0 %v874, 32
    %v877 = vpop.permute.xlu0 %876
    %vm879 = vcmask 254976
    %v880 = vsel %vm879, %v877, 0.0
    %881 = vadd.xlane.f32.xlu0 %v880
    %v882 = vpop.xlane.xlu0 %881
    %v883 = vld [vmem:[#allocation2] sm:$0x1]
    %v885 = vlaneseq
    %v886 = vshrl.u32 %v885, 7
    %v887 = vsub.s32 0, %v886
    %v888 = vrot.slane %v883, %v887
    %v890 = vadd.f32 %v882, %v888
    %vm891 = vcmask 1024
    %892 = vst.msk [vmem:[%s4] sm:$0x3] %vm891, %v890
    // Predicated region
    $region26: #{tpu_custom_call.1} parent=1 // pred_check
      _
    $region27: #{tpu_custom_call.1} parent=1 // pred_check_branch
      %894 = sbr.rel (0) target = $region29
    $region28: #{tpu_custom_call.1} parent=1 // pred_region
      _
    $region29: #{tpu_custom_call.1} parent=1 // pred_fallthru
      _
    // Predicated region
    $region30: #{tpu_custom_call.1} parent=1 // pred_check
      _
    $region31: #{tpu_custom_call.1} parent=1 // pred_check_branch
      %896 = sbr.rel (0) target = $region33
    $region32: #{tpu_custom_call.1} parent=1 // pred_region
      _
    $region33: #{tpu_custom_call.1} parent=1 // pred_fallthru
      _
    %897 = vsyncpa [#allocation4], 1
    %898 = vsyncpa [#allocation6], 1

</llo_original>
